<compile_context>
chip_gen: v6e
topology: v6e:2x2x1
jax: 0.10.0
libtpu: 0.0.40
codegen_flags: <defaults>
</compile_context>

<pallas_src>
import math
from functools import partial

import jax
import jax.numpy as jnp
from jax.experimental import pallas as pl
from jax.experimental.pallas import tpu as pltpu

LANE = 128
SUBLANE = 8
_INV_SQRT2 = 1.0 / math.sqrt(2.0)
_GELU_TANH_C = math.sqrt(2.0 / math.pi)


def _round_up(x, m):
    return (x + m - 1) // m * m


def _cdiv(a, b):
    return -(-a // b)


# ----------------------------------------------------------------------------
# In-kernel math helpers
# ----------------------------------------------------------------------------
def _gelu(h, approximate):
    if approximate:
        # tanh approximation runs on the EUP slot (overlaps MXU/VALU).
        return 0.5 * h * (1.0 + jnp.tanh(_GELU_TANH_C * (h + 0.044715 * h * h * h)))
    # exact erf GELU (matches nn.GELU default)
    return 0.5 * h * (1.0 + jax.lax.erf(h * _INV_SQRT2))


def _leaky_relu(h):
    return jnp.where(h >= 0.0, h, 0.01 * h)


def _activate_and_project(h, p_ref, pb_ref, *, d, lane_split, approx_gelu):
    """h: [TM, 2D] f32 fused pre-activation.  Returns f32 logits [TM, Lp]."""
    if lane_split:
        # D % 128 == 0: lane-aligned halves — erf only over D columns, and the
        # two head projections accumulate into the same f32 result (== l1+l2).
        h1 = h[:, :d]
        h2 = h[:, d:]
        a1 = _gelu(h1, approx_gelu).astype(jnp.bfloat16)
        a2 = _leaky_relu(h2).astype(jnp.bfloat16)
        logits = jnp.dot(a1, p_ref[:d, :], preferred_element_type=jnp.float32)
        logits = logits + jnp.dot(a2, p_ref[d:, :], preferred_element_type=jnp.float32)
    else:
        # Fallback for lane-unaligned D (small/debug shapes): mask-select the
        # per-head activation over the fused [TM, 2D] tile.
        col = jax.lax.broadcasted_iota(jnp.int32, h.shape, dimension=1)
        act = jnp.where(col < d, _gelu(h, approx_gelu), _leaky_relu(h)).astype(jnp.bfloat16)
        logits = jnp.dot(act, p_ref[...], preferred_element_type=jnp.float32)
    return logits + pb_ref[...]


# ----------------------------------------------------------------------------
# Kernel A: resident fused weights, grid over batch only
#   x   [TM, D]    bf16 input tile
#   w   [D, 2D]    bf16  = concat([e1_dense.W^T, e2_dense.W^T], axis=1)
#   b   [1, 2D]    f32   = concat([e1_dense.b,   e2_dense.b])
#   p   [2D, Lp]   bf16  = concat([e1_out_proj.W^T_pad, e2_out_proj.W^T_pad], axis=0)
#   pb  [1, Lp]    f32   = e1_out_proj.b_pad + e2_out_proj.b_pad
#   out [TM, Lp]   f32   lane-dense logits (Lp = num_labels padded to 128)
# ----------------------------------------------------------------------------
def _ensemble_mlp_kernel(x_ref, w_ref, b_ref, p_ref, pb_ref, out_ref, *,
                         d, lane_split, approx_gelu):
    h = jnp.dot(x_ref[...], w_ref[...], preferred_element_type=jnp.float32) + b_ref[...]
    out_ref[...] = _activate_and_project(
        h, p_ref, pb_ref, d=d, lane_split=lane_split,
        approx_gelu=approx_gelu).astype(out_ref.dtype)


# ----------------------------------------------------------------------------
# Kernel B: K-split over D (reduction axis last, "arbitrary") with an f32
# accumulator scratch.  Used when the fused weight slab cannot stay resident
# (large D on v7x's 64 MiB VMEM).
# ----------------------------------------------------------------------------
def _ensemble_mlp_ksplit_kernel(x_ref, w_ref, b_ref, p_ref, pb_ref, out_ref,
                                h_acc, *, d, lane_split, approx_gelu):
    k = pl.program_id(1)

    @pl.when(k == 0)
    def _():
        h_acc[...] = jnp.zeros_like(h_acc)

    h_acc[...] += jnp.dot(x_ref[...], w_ref[...], preferred_element_type=jnp.float32)

    @pl.when(k == pl.num_programs(1) - 1)
    def _():
        h = h_acc[...] + b_ref[...]
        out_ref[...] = _activate_and_project(
            h, p_ref, pb_ref, d=d, lane_split=lane_split,
            approx_gelu=approx_gelu).astype(out_ref.dtype)


# ----------------------------------------------------------------------------
# Wrapper
# ----------------------------------------------------------------------------
def _vmem_budget_bytes():
    try:
        cap = int(pltpu.get_tpu_info().vmem_capacity_bytes)
    except Exception:
        cap = 64 << 20  # conservative (v7x-sized) fallback
    # Leave ~16 MiB headroom for Mosaic-internal scratch / temporaries.
    return max(cap - (16 << 20), 32 << 20)


def _pick_block_k(d, max_tk=512):
    """Largest multiple of 128 that divides d (x tile lane dim must stay
    128-aligned); None if no such divisor exists."""
    best = None
    tk = LANE
    while tk <= min(max_tk, d):
        if d % tk == 0:
            best = tk
        tk += LANE
    return best


def ensemble_mlp_head(x, fused, *, block_m=256, block_k=None, approximate_gelu=False):
    """x: [B, D] model_input (post CLS-concat).  Returns logits [B, num_labels]."""
    B, D = x.shape
    w, b, p, pb = fused["w"], fused["b"], fused["p"], fused["pb"]
    num_labels = fused["num_labels"]
    Lp = p.shape[-1]
    if D != w.shape[0]:
        raise ValueError(
            f"model_input width {D} does not match fused weights {w.shape[0]} "
            "(note: the reference module's self-concat only yields "
            "hidden*select_layers_len for select_layers_len <= 2)")

    if x.dtype != jnp.bfloat16:
        x = x.astype(jnp.bfloat16)

    # ---- Batch tiling: minimal padding, and >= 2 grid steps for B >= 16 so
    # the "parallel" axis can be split across v7x's two TensorCores.
    n_steps = max(1, _cdiv(B, block_m))
    if B >= 16:
        n_steps = max(n_steps, 2)
    tm = _round_up(_cdiv(B, n_steps), SUBLANE)
    Bp = n_steps * tm
    if Bp != B:
        x = jnp.pad(x, ((0, Bp - B), (0, 0)))

    # ---- VMEM accounting (generation-aware) and resident-vs-K-split choice.
    vmem_budget = _vmem_budget_bytes()
    weight_bytes = w.nbytes + b.nbytes + p.nbytes + pb.nbytes
    stream_bytes = 2 * (tm * D * 2 + tm * Lp * 4)      # double-buffered x / out tiles
    interm_bytes = 4 * tm * (2 * D) * 4                 # f32 activation intermediates
    resident_needed = 2 * weight_bytes + stream_bytes + interm_bytes  # conservative (2x weights)

    lane_split = (D % LANE) == 0
    if block_k is None and lane_split and resident_needed > int(0.8 * vmem_budget):
        block_k = _pick_block_k(D)
    use_ksplit = (block_k is not None and 0 < block_k < D
                  and D % block_k == 0 and block_k % LANE == 0)

    if use_ksplit:
        needed = (2 * (block_k * 2 * D * 2)              # double-buffered w k-tiles
                  + (b.nbytes + p.nbytes + pb.nbytes)    # resident small slabs
                  + 2 * (tm * block_k * 2 + tm * Lp * 4)
                  + tm * 2 * D * 4                        # f32 accumulator scratch
                  + interm_bytes)
    else:
        needed = resident_needed
    vmem_limit = int(min(vmem_budget, max(needed * 3 // 2, 32 << 20)))

    # Advisory cost for XLA's scheduler around this custom call.
    flops = 2 * Bp * D * (2 * D) + 2 * Bp * (2 * D) * Lp
    bytes_accessed = (weight_bytes + Bp * D * 2 + Bp * Lp * 4)
    cost = pl.CostEstimate(flops=int(flops), transcendentals=int(Bp * D),
                           bytes_accessed=int(bytes_accessed))

    def run(single_buffer_weights):
        def const_spec(shape):
            idx = (lambda i, k: (0, 0)) if use_ksplit else (lambda i: (0, 0))
            if single_buffer_weights:
                # Constant index_map -> no re-fetch; one VMEM buffer is enough.
                return pl.BlockSpec(shape, idx, pipeline_mode=pl.Buffered(1))
            return pl.BlockSpec(shape, idx)

        if use_ksplit:
            grid = (n_steps, D // block_k)
            kern = partial(_ensemble_mlp_ksplit_kernel, d=D,
                           lane_split=lane_split, approx_gelu=approximate_gelu)
            in_specs = [
                pl.BlockSpec((tm, block_k), lambda i, k: (i, k)),    # x: batch x K tiles
                pl.BlockSpec((block_k, 2 * D), lambda i, k: (k, 0)), # w: streamed K tiles
                const_spec((1, 2 * D)),                              # fused dense bias
                const_spec((2 * D, Lp)),                             # fused projection weights
                const_spec((1, Lp)),                                 # fused projection bias
            ]
            out_spec = pl.BlockSpec((tm, Lp), lambda i, k: (i, 0))
            scratch = [pltpu.VMEM((tm, 2 * D), jnp.float32)]
            dims = ("parallel", "arbitrary")
        else:
            grid = (n_steps,)
            kern = partial(_ensemble_mlp_kernel, d=D,
                           lane_split=lane_split, approx_gelu=approximate_gelu)
            in_specs = [
                pl.BlockSpec((tm, D), lambda i: (i, 0)),             # x: streamed batch tiles
                const_spec((D, 2 * D)),                              # fused dense weights (resident)
                const_spec((1, 2 * D)),                              # fused dense bias
                const_spec((2 * D, Lp)),                             # fused projection weights
                const_spec((1, Lp)),                                 # fused projection bias
            ]
            out_spec = pl.BlockSpec((tm, Lp), lambda i: (i, 0))
            scratch = []
            dims = ("parallel",)

        return pl.pallas_call(
            kern,
            out_shape=jax.ShapeDtypeStruct((Bp, Lp), jnp.float32),
            grid=grid,
            in_specs=in_specs,
            out_specs=out_spec,
            scratch_shapes=scratch,
            compiler_params=pltpu.CompilerParams(
                dimension_semantics=dims, vmem_limit_bytes=vmem_limit),
            cost_estimate=cost,
        )(x, w, b, p, pb)

    try:
        out = run(True)
    except Exception:
        # TODO(synk): pipeline_mode=pl.Buffered(1) not accepted by this
        # JAX/Mosaic build — fall back to default double-buffered weight blocks.
        out = run(False)
    return out[:B, :num_labels]


# ----------------------------------------------------------------------------
# Module-level forward (glue in plain JAX)
# ----------------------------------------------------------------------------
def select_cls_input(hidden_states, select_layers_len, dtype=jnp.bfloat16):
    # Faithful to the reference code's bug: for i > 0 it concatenates the
    # CURRENT layer's CLS with ITSELF, discarding the running result.
    # Cast at the slice so XLA fuses it into the concat (no standalone pass).
    selected = hidden_states[len(hidden_states) - select_layers_len:]
    out = None
    for i in range(select_layers_len):
        cls = selected[i][:, 0, :].astype(dtype)
        out = cls if i == 0 else jnp.concatenate((cls, cls), axis=1)
    return out


def forward(hidden_states, fused_params, select_layers_len, labels=None):
    # TODO(synk): ELECTRA transformer backbone not re-implemented; per-layer
    # hidden states are taken as inputs (stand-in for output_hidden_states[1]).
    model_input = select_cls_input(hidden_states, select_layers_len, dtype=jnp.bfloat16)
    # dropout = identity (eval / inference mode)
    logits = ensemble_mlp_head(model_input, fused_params)
    if labels is not None:
        # CrossEntropyLoss (mean reduction) — plain-JAX glue
        logp = jax.nn.log_softmax(logits, axis=-1)
        nll = -jnp.take_along_axis(logp, labels[:, None], axis=-1)[:, 0]
        return jnp.mean(nll)
    return logits


# ----------------------------------------------------------------------------
# Parameters: raw (torch-like, f32, stored [in, out]) and fused/bf16 for kernel
# ----------------------------------------------------------------------------
def init_params(key, hidden_size, select_layers_len, num_labels):
    if select_layers_len > 2:
        # The reference module's self-concat bug means the concat width is
        # 2*hidden for any select_layers_len >= 2, so D = hidden*select_layers_len
        # only matches for select_layers_len <= 2.
        raise ValueError("select_layers_len > 2 is inconsistent with the reference module")
    D = hidden_size * select_layers_len
    ks = jax.random.split(key, 8)
    s = 1.0 / math.sqrt(D)
    return {
        "w1":  jax.random.uniform(ks[0], (D, D), jnp.float32, -s, s),
        "b1":  jax.random.uniform(ks[1], (1, D), jnp.float32, -s, s),
        "p1w": jax.random.uniform(ks[2], (D, num_labels), jnp.float32, -s, s),
        "p1b": jax.random.uniform(ks[3], (1, num_labels), jnp.float32, -s, s),
        "w2":  jax.random.uniform(ks[4], (D, D), jnp.float32, -s, s),
        "b2":  jax.random.uniform(ks[5], (1, D), jnp.float32, -s, s),
        "p2w": jax.random.uniform(ks[6], (D, num_labels), jnp.float32, -s, s),
        "p2b": jax.random.uniform(ks[7], (1, num_labels), jnp.float32, -s, s),
    }


def prepare_fused_params(params, num_labels):
    Lp = _round_up(max(num_labels, 1), LANE)

    def pad_l(a):  # zero-pad last dim to a lane-dense width
        return jnp.pad(a, ((0, 0), (0, Lp - a.shape[-1])))

    w = jnp.concatenate([params["w1"], params["w2"]], axis=1).astype(jnp.bfloat16)
    b = jnp.concatenate([params["b1"], params["b2"]], axis=1).astype(jnp.float32)
    p = jnp.concatenate([pad_l(params["p1w"]), pad_l(params["p2w"])],
                        axis=0).astype(jnp.bfloat16)
    pb = (pad_l(params["p1b"]) + pad_l(params["p2b"])).astype(jnp.float32)
    return {"w": w, "b": b, "p": p, "pb": pb, "num_labels": num_labels}


# ----------------------------------------------------------------------------
# Pure-JAX references
# ----------------------------------------------------------------------------
def reference_head_f32(x, params):
    h1 = x @ params["w1"] + params["b1"]
    h1 = 0.5 * h1 * (1.0 + jax.lax.erf(h1 / jnp.sqrt(2.0)))
    l1 = h1 @ params["p1w"] + params["p1b"]
    h2 = x @ params["w2"] + params["b2"]
    h2 = jnp.where(h2 >= 0, h2, 0.01 * h2)
    l2 = h2 @ params["p2w"] + params["p2b"]
    return l1 + l2


def reference_head_bf16(x, params):
    # Same precision recipe as the kernel (bf16 MXU inputs, f32 accumulation).
    xb = x.astype(jnp.bfloat16)
    w1 = params["w1"].astype(jnp.bfloat16); w2 = params["w2"].astype(jnp.bfloat16)
    p1 = params["p1w"].astype(jnp.bfloat16); p2 = params["p2w"].astype(jnp.bfloat16)
    h1 = jnp.dot(xb, w1, preferred_element_type=jnp.float32) + params["b1"]
    h1 = 0.5 * h1 * (1.0 + jax.lax.erf(h1 / jnp.sqrt(2.0)))
    h2 = jnp.dot(xb, w2, preferred_element_type=jnp.float32) + params["b2"]
    h2 = jnp.where(h2 >= 0, h2, 0.01 * h2)
    l1 = jnp.dot(h1.astype(jnp.bfloat16), p1, preferred_element_type=jnp.float32) + params["p1b"]
    l2 = jnp.dot(h2.astype(jnp.bfloat16), p2, preferred_element_type=jnp.float32) + params["p2b"]
    return l1 + l2


if __name__ == "__main__":
    key = jax.random.PRNGKey(0)
    k_hs, k_par, k_x2, k_par2 = jax.random.split(key, 4)

    # ------------------------------------------------------------------
    # Config 1: module-faithful small shapes (batch=2, seq=8, hidden=32,
    # select_layers_len=2 -> D=64, num_labels=5).  Exercises the
    # lane-unaligned masked-activation fallback path.
    # ------------------------------------------------------------------
    B, S, H = 2, 8, 32
    NUM_HIDDEN_STATES = 4
    SELECT_LAYERS_LEN = 2
    NUM_LABELS = 5

    hs_keys = jax.random.split(k_hs, NUM_HIDDEN_STATES)
    hidden_states = [jax.random.normal(k, (B, S, H), jnp.float32) for k in hs_keys]

    params = init_params(k_par, H, SELECT_LAYERS_LEN, NUM_LABELS)
    fused = prepare_fused_params(params, NUM_LABELS)

    logits = jax.block_until_ready(forward(hidden_states, fused, SELECT_LAYERS_LEN))
    assert logits.shape == (B, NUM_LABELS)

    x_ref = select_cls_input(hidden_states, SELECT_LAYERS_LEN, dtype=jnp.float32)
    ref_bf16 = reference_head_bf16(x_ref, params)
    assert jnp.allclose(logits, ref_bf16, atol=2e-3, rtol=2e-3), "mismatch vs bf16 reference"
    ref_f32 = reference_head_f32(x_ref, params)
    assert jnp.allclose(logits, ref_f32, atol=2e-1, rtol=1e-1), "mismatch vs f32 reference"

    # Loss branch (plain-JAX glue).
    labels = jnp.array([1, 3], dtype=jnp.int32)
    loss = jax.block_until_ready(forward(hidden_states, fused, SELECT_LAYERS_LEN, labels))
    assert loss.shape == ()

    # ------------------------------------------------------------------
    # Config 2: lane-aligned D (hidden=128 -> D=256, batch=16).  Exercises the
    # sliced-activation path, the >=2-step batch grid, the (forced) K-split
    # reduction kernel, and the optional approximate-GELU path.
    # ------------------------------------------------------------------
    H2, B2 = 128, 16
    D2 = H2 * SELECT_LAYERS_LEN
    params2 = init_params(k_par2, H2, SELECT_LAYERS_LEN, NUM_LABELS)
    fused2 = prepare_fused_params(params2, NUM_LABELS)
    x2 = jax.random.normal(k_x2, (B2, D2), jnp.float32)
    ref2 = reference_head_bf16(x2, params2)

    out_resident = jax.block_until_ready(
        ensemble_mlp_head(x2.astype(jnp.bfloat16), fused2))
    assert out_resident.shape == (B2, NUM_LABELS)
    assert jnp.allclose(out_resident, ref2, atol=5e-3, rtol=5e-3), "mismatch (resident path)"

    out_ksplit = jax.block_until_ready(
        ensemble_mlp_head(x2.astype(jnp.bfloat16), fused2, block_k=128))
    assert jnp.allclose(out_ksplit, ref2, atol=5e-3, rtol=5e-3), "mismatch (K-split path)"

    out_approx = jax.block_until_ready(
        ensemble_mlp_head(x2.astype(jnp.bfloat16), fused2, approximate_gelu=True))
    assert jnp.allclose(out_approx, ref2, atol=5e-2, rtol=5e-2), "mismatch (approx GELU)"

    print("KERNEL_OK")
</pallas_src>

<mosaic_0001>
module attributes {stable_mosaic.version = 11 : i64} {
  func.func @_ensemble_mlp_kernel(%arg0: i32, %arg1: memref<8x64xbf16, #tpu.memory_space<vmem>>, %arg2: memref<64x128xbf16, #tpu.memory_space<vmem>>, %arg3: memref<1x128xf32, #tpu.memory_space<vmem>>, %arg4: memref<128x128xbf16, #tpu.memory_space<vmem>>, %arg5: memref<1x128xf32, #tpu.memory_space<vmem>>, %arg6: memref<8x128xf32, #tpu.memory_space<vmem>>) attributes {dimension_semantics = [#tpu.dimension_semantics<parallel>], iteration_bounds = array<i64: 1>, scalar_prefetch = 0 : i64, scratch_operands = 0 : i64, tpu.core_type = #tpu.core_type<tc>, window_params = [{transform_indices = @transform_0, window_bounds = array<i64: 8, 64>}, {pipeline_mode = #tpu.pipeline_mode<synchronous>, transform_indices = @transform_1, window_bounds = array<i64: 64, 128>}, {pipeline_mode = #tpu.pipeline_mode<synchronous>, transform_indices = @transform_2, window_bounds = array<i64: 1, 128>}, {pipeline_mode = #tpu.pipeline_mode<synchronous>, transform_indices = @transform_3, window_bounds = array<i64: 128, 128>}, {pipeline_mode = #tpu.pipeline_mode<synchronous>, transform_indices = @transform_4, window_bounds = array<i64: 1, 128>}, {transform_indices = @transform_5, window_bounds = array<i64: 8, 128>}]} {
    %c0 = arith.constant 0 : index
    %c0_0 = arith.constant 0 : index
    %0 = vector.load %arg1[%c0, %c0_0] : memref<8x64xbf16, #tpu.memory_space<vmem>>, vector<8x64xbf16>
    %c0_1 = arith.constant 0 : index
    %c0_2 = arith.constant 0 : index
    %1 = vector.load %arg2[%c0_1, %c0_2] : memref<64x128xbf16, #tpu.memory_space<vmem>>, vector<64x128xbf16>
    %cst = arith.constant dense<0.000000e+00> : vector<8x128xf32>
    %2 = tpu.matmul %0, %1, %cst {dimension_numbers = #tpu.dot_dimension_numbers<[1], [0], [0], [1], [0, 0, 1, 1], [], []>} : vector<8x64xbf16>, vector<64x128xbf16>, vector<8x128xf32> -> vector<8x128xf32>
    %c0_3 = arith.constant 0 : index
    %c0_4 = arith.constant 0 : index
    %3 = vector.load %arg3[%c0_3, %c0_4] : memref<1x128xf32, #tpu.memory_space<vmem>>, vector<1x128xf32>
    %4 = vector.broadcast %3 : vector<1x128xf32> to vector<8x128xf32>
    %5 = arith.addf %2, %4 : vector<8x128xf32>
    %6 = tpu.iota {dimensions = array<i32: 1>} : vector<8x128xi32>
    %c64_i32 = arith.constant 64 : i32
    %7 = vector.broadcast %c64_i32 : i32 to vector<8x128xi32>
    %8 = arith.cmpi slt, %6, %7 : vector<8x128xi32>
    %cst_5 = arith.constant 5.000000e-01 : f32
    %9 = vector.broadcast %cst_5 : f32 to vector<8x128xf32>
    %10 = arith.mulf %9, %5 : vector<8x128xf32>
    %cst_6 = arith.constant 0.707106769 : f32
    %11 = vector.broadcast %cst_6 : f32 to vector<8x128xf32>
    %12 = arith.mulf %5, %11 : vector<8x128xf32>
    %13 = math.erf %12 : vector<8x128xf32>
    %cst_7 = arith.constant 1.000000e+00 : f32
    %14 = vector.broadcast %cst_7 : f32 to vector<8x128xf32>
    %15 = arith.addf %14, %13 : vector<8x128xf32>
    %16 = arith.mulf %10, %15 : vector<8x128xf32>
    %cst_8 = arith.constant 0.000000e+00 : f32
    %17 = vector.broadcast %cst_8 : f32 to vector<8x128xf32>
    %18 = arith.cmpf oge, %5, %17 : vector<8x128xf32>
    %cst_9 = arith.constant 0.00999999977 : f32
    %19 = vector.broadcast %cst_9 : f32 to vector<8x128xf32>
    %20 = arith.mulf %19, %5 : vector<8x128xf32>
    %21 = arith.select %18, %5, %20 : vector<8x128xi1>, vector<8x128xf32>
    %22 = arith.select %8, %16, %21 : vector<8x128xi1>, vector<8x128xf32>
    %23 = arith.truncf %22 : vector<8x128xf32> to vector<8x128xbf16>
    %c0_10 = arith.constant 0 : index
    %c0_11 = arith.constant 0 : index
    %24 = vector.load %arg4[%c0_10, %c0_11] : memref<128x128xbf16, #tpu.memory_space<vmem>>, vector<128x128xbf16>
    %cst_12 = arith.constant dense<0.000000e+00> : vector<8x128xf32>
    %25 = tpu.matmul %23, %24, %cst_12 {dimension_numbers = #tpu.dot_dimension_numbers<[1], [0], [0], [1], [0, 0, 1, 1], [], []>} : vector<8x128xbf16>, vector<128x128xbf16>, vector<8x128xf32> -> vector<8x128xf32>
    %c0_13 = arith.constant 0 : index
    %c0_14 = arith.constant 0 : index
    %26 = vector.load %arg5[%c0_13, %c0_14] : memref<1x128xf32, #tpu.memory_space<vmem>>, vector<1x128xf32>
    %27 = vector.broadcast %26 : vector<1x128xf32> to vector<8x128xf32>
    %28 = arith.addf %25, %27 : vector<8x128xf32>
    %c0_15 = arith.constant 0 : index
    %c0_16 = arith.constant 0 : index
    %29 = vector.load %arg6[%c0_15, %c0_16] : memref<8x128xf32, #tpu.memory_space<vmem>>, vector<8x128xf32>
    tpu.vector_store %arg6[%c0_15, %c0_16], %28 {strides = array<i32>} : memref<8x128xf32, #tpu.memory_space<vmem>>, vector<8x128xf32>,
    return
  }
  func.func @transform_0(%arg0: i32) -> (i32, i32) {
    %c0_i32 = arith.constant 0 : i32
    %c0_i32_0 = arith.constant 0 : i32
    return %arg0, %c0_i32 : i32, i32
  }
  func.func @transform_1(%arg0: i32) -> (i32, i32) {
    %c0_i32 = arith.constant 0 : i32
    %c0_i32_0 = arith.constant 0 : i32
    %c0_i32_1 = arith.constant 0 : i32
    return %c0_i32, %c0_i32_0 : i32, i32
  }
  func.func @transform_2(%arg0: i32) -> (i32, i32) {
    %c0_i32 = arith.constant 0 : i32
    %c0_i32_0 = arith.constant 0 : i32
    %c0_i32_1 = arith.constant 0 : i32
    return %c0_i32, %c0_i32_0 : i32, i32
  }
  func.func @transform_3(%arg0: i32) -> (i32, i32) {
    %c0_i32 = arith.constant 0 : i32
    %c0_i32_0 = arith.constant 0 : i32
    %c0_i32_1 = arith.constant 0 : i32
    return %c0_i32, %c0_i32_0 : i32, i32
  }
  func.func @transform_4(%arg0: i32) -> (i32, i32) {
    %c0_i32 = arith.constant 0 : i32
    %c0_i32_0 = arith.constant 0 : i32
    %c0_i32_1 = arith.constant 0 : i32
    return %c0_i32, %c0_i32_0 : i32, i32
  }
  func.func @transform_5(%arg0: i32) -> (i32, i32) {
    %c0_i32 = arith.constant 0 : i32
    %c0_i32_0 = arith.constant 0 : i32
    return %arg0, %c0_i32 : i32, i32
  }
}

module attributes {stable_mosaic.version = 11 : i64} {
  func.func @_ensemble_mlp_kernel(%arg0: i32, %arg1: memref<8x64xbf16, #tpu.memory_space<vmem>>, %arg2: memref<64x128xbf16, #tpu.memory_space<vmem>>, %arg3: memref<1x128xf32, #tpu.memory_space<vmem>>, %arg4: memref<128x128xbf16, #tpu.memory_space<vmem>>, %arg5: memref<1x128xf32, #tpu.memory_space<vmem>>, %arg6: memref<8x128xf32, #tpu.memory_space<vmem>>) attributes {dimension_semantics = [#tpu.dimension_semantics<parallel>], iteration_bounds = array<i64: 1>, scalar_prefetch = 0 : i64, scratch_operands = 0 : i64, tpu.core_type = #tpu.core_type<tc>, window_params = [{transform_indices = @transform_0, window_bounds = array<i64: 8, 64>}, {pipeline_mode = #tpu.pipeline_mode<synchronous>, transform_indices = @transform_1, window_bounds = array<i64: 64, 128>}, {pipeline_mode = #tpu.pipeline_mode<synchronous>, transform_indices = @transform_2, window_bounds = array<i64: 1, 128>}, {pipeline_mode = #tpu.pipeline_mode<synchronous>, transform_indices = @transform_3, window_bounds = array<i64: 128, 128>}, {pipeline_mode = #tpu.pipeline_mode<synchronous>, transform_indices = @transform_4, window_bounds = array<i64: 1, 128>}, {transform_indices = @transform_5, window_bounds = array<i64: 8, 128>}]} {
    %c0 = arith.constant 0 : index
    %c0_0 = arith.constant 0 : index
    %0 = vector.load %arg1[%c0, %c0_0] : memref<8x64xbf16, #tpu.memory_space<vmem>>, vector<8x64xbf16>
    %c0_1 = arith.constant 0 : index
    %c0_2 = arith.constant 0 : index
    %1 = vector.load %arg2[%c0_1, %c0_2] : memref<64x128xbf16, #tpu.memory_space<vmem>>, vector<64x128xbf16>
    %cst = arith.constant dense<0.000000e+00> : vector<8x128xf32>
    %2 = tpu.matmul %0, %1, %cst {dimension_numbers = #tpu.dot_dimension_numbers<[1], [0], [0], [1], [0, 0, 1, 1], [], []>} : vector<8x64xbf16>, vector<64x128xbf16>, vector<8x128xf32> -> vector<8x128xf32>
    %c0_3 = arith.constant 0 : index
    %c0_4 = arith.constant 0 : index
    %3 = vector.load %arg3[%c0_3, %c0_4] : memref<1x128xf32, #tpu.memory_space<vmem>>, vector<1x128xf32>
    %4 = vector.broadcast %3 : vector<1x128xf32> to vector<8x128xf32>
    %5 = arith.addf %2, %4 : vector<8x128xf32>
    %6 = tpu.iota {dimensions = array<i32: 1>} : vector<8x128xi32>
    %c64_i32 = arith.constant 64 : i32
    %7 = vector.broadcast %c64_i32 : i32 to vector<8x128xi32>
    %8 = arith.cmpi slt, %6, %7 : vector<8x128xi32>
    %cst_5 = arith.constant 5.000000e-01 : f32
    %9 = vector.broadcast %cst_5 : f32 to vector<8x128xf32>
    %10 = arith.mulf %9, %5 : vector<8x128xf32>
    %cst_6 = arith.constant 0.707106769 : f32
    %11 = vector.broadcast %cst_6 : f32 to vector<8x128xf32>
    %12 = arith.mulf %5, %11 : vector<8x128xf32>
    %13 = math.erf %12 : vector<8x128xf32>
    %cst_7 = arith.constant 1.000000e+00 : f32
    %14 = vector.broadcast %cst_7 : f32 to vector<8x128xf32>
    %15 = arith.addf %14, %13 : vector<8x128xf32>
    %16 = arith.mulf %10, %15 : vector<8x128xf32>
    %cst_8 = arith.constant 0.000000e+00 : f32
    %17 = vector.broadcast %cst_8 : f32 to vector<8x128xf32>
    %18 = arith.cmpf oge, %5, %17 : vector<8x128xf32>
    %cst_9 = arith.constant 0.00999999977 : f32
    %19 = vector.broadcast %cst_9 : f32 to vector<8x128xf32>
    %20 = arith.mulf %19, %5 : vector<8x128xf32>
    %21 = arith.select %18, %5, %20 : vector<8x128xi1>, vector<8x128xf32>
    %22 = arith.select %8, %16, %21 : vector<8x128xi1>, vector<8x128xf32>
    %23 = arith.truncf %22 : vector<8x128xf32> to vector<8x128xbf16>
    %c0_10 = arith.constant 0 : index
    %c0_11 = arith.constant 0 : index
    %24 = vector.load %arg4[%c0_10, %c0_11] : memref<128x128xbf16, #tpu.memory_space<vmem>>, vector<128x128xbf16>
    %cst_12 = arith.constant dense<0.000000e+00> : vector<8x128xf32>
    %25 = tpu.matmul %23, %24, %cst_12 {dimension_numbers = #tpu.dot_dimension_numbers<[1], [0], [0], [1], [0, 0, 1, 1], [], []>} : vector<8x128xbf16>, vector<128x128xbf16>, vector<8x128xf32> -> vector<8x128xf32>
    %c0_13 = arith.constant 0 : index
    %c0_14 = arith.constant 0 : index
    %26 = vector.load %arg5[%c0_13, %c0_14] : memref<1x128xf32, #tpu.memory_space<vmem>>, vector<1x128xf32>
    %27 = vector.broadcast %26 : vector<1x128xf32> to vector<8x128xf32>
    %28 = arith.addf %25, %27 : vector<8x128xf32>
    %c0_15 = arith.constant 0 : index
    %c0_16 = arith.constant 0 : index
    %29 = vector.load %arg6[%c0_15, %c0_16] : memref<8x128xf32, #tpu.memory_space<vmem>>, vector<8x128xf32>
    tpu.vector_store %arg6[%c0_15, %c0_16], %28 {strides = array<i32>} : memref<8x128xf32, #tpu.memory_space<vmem>>, vector<8x128xf32>,
    return
  }
  func.func @transform_0(%arg0: i32) -> (i32, i32) {
    %c0_i32 = arith.constant 0 : i32
    %c0_i32_0 = arith.constant 0 : i32
    return %arg0, %c0_i32 : i32, i32
  }
  func.func @transform_1(%arg0: i32) -> (i32, i32) {
    %c0_i32 = arith.constant 0 : i32
    %c0_i32_0 = arith.constant 0 : i32
    %c0_i32_1 = arith.constant 0 : i32
    return %c0_i32, %c0_i32_0 : i32, i32
  }
  func.func @transform_2(%arg0: i32) -> (i32, i32) {
    %c0_i32 = arith.constant 0 : i32
    %c0_i32_0 = arith.constant 0 : i32
    %c0_i32_1 = arith.constant 0 : i32
    return %c0_i32, %c0_i32_0 : i32, i32
  }
  func.func @transform_3(%arg0: i32) -> (i32, i32) {
    %c0_i32 = arith.constant 0 : i32
    %c0_i32_0 = arith.constant 0 : i32
    %c0_i32_1 = arith.constant 0 : i32
    return %c0_i32, %c0_i32_0 : i32, i32
  }
  func.func @transform_4(%arg0: i32) -> (i32, i32) {
    %c0_i32 = arith.constant 0 : i32
    %c0_i32_0 = arith.constant 0 : i32
    %c0_i32_1 = arith.constant 0 : i32
    return %c0_i32, %c0_i32_0 : i32, i32
  }
  func.func @transform_5(%arg0: i32) -> (i32, i32) {
    %c0_i32 = arith.constant 0 : i32
    %c0_i32_0 = arith.constant 0 : i32
    return %arg0, %c0_i32 : i32, i32
  }
}

</mosaic_0001>

<llo_original>
// kernel: tpu_custom_call.1
$region0: #{tpu_custom_call.1}
  #allocation0 [shape = 'u32[]', space=smem, size = 0x4, offset = 0x4, fixed_abs, tag = 'smem constant byte address 0x4 - core index']
  #allocation1 [shape = 'u32[144,128]{1,0:T(1,128)}', space=vmem, size = 0x12000, scoped, tag = 'internal scratch']
  %s0 = inlined_call_operand.hbm [shape: bf16[8,64], index: 0, kind: input, shape index: {}]
  %s1 = inlined_call_operand.hbm [shape: bf16[64,128], index: 1, kind: input, shape index: {}]
  %s2 = inlined_call_operand.vmem [shape: f32[1,128], index: 2, kind: input, shape index: {}]
  %s3 = inlined_call_operand.hbm [shape: bf16[128,128], index: 3, kind: input, shape index: {}]
  %s4 = inlined_call_operand.vmem [shape: f32[1,128], index: 4, kind: input, shape index: {}]
  %s5 = inlined_call_operand.hbm [shape: f32[8,128], index: 5, kind: output, shape index: {}]
  %s6 = sld [smem:[#allocation0]]
  $region42: #{tpu_custom_call.1} parent=0
    _
  %s8 = ssub.s32 1, %s6
  %s9 = scalar_select 0, %s8, %s6
  $region1: #{tpu_custom_call.1} parent=0
    #allocation2 [shape = 'u8[2048]{0}', space=vmem, size = 0x800, scoped, tag = 'input window, operand 0, single buffered']
    #allocation3 [shape = 's32[1]{0}', space=sflag, size = 0x4, scoped, tag = 'scoped memory for tpu_custom_call.1']
    #allocation4 [shape = 's32[1]{0}', space=sflag, size = 0x4, scoped, tag = 'scoped memory for tpu_custom_call.1']
    #allocation5 [shape = 'u8[16384]{0}', space=vmem, size = 0x4000, scoped, tag = 'input window, operand 1, single buffered']
    #allocation6 [shape = 's32[1]{0}', space=sflag, size = 0x4, scoped, tag = 'scoped memory for tpu_custom_call.1']
    #allocation7 [shape = 'u8[32768]{0}', space=vmem, size = 0x8000, scoped, tag = 'input window, operand 3, single buffered']
    #allocation8 [shape = 'u8[4096]{0}', space=vmem, size = 0x1000, scoped, tag = 'output window, operand 0, single buffered']
    %10 = vsyncpa [#allocation3], 0
    %11 = vsyncpa [#allocation6], 0
    %12 = vsyncpa [#allocation4], 0
    // Predicated region
    $region2: #{tpu_custom_call.1} parent=1 // pred_check
      _
    $region3: #{tpu_custom_call.1} parent=1 // pred_check_branch
      %14 = sbr.rel (0) target = $region5
    $region4: #{tpu_custom_call.1} parent=1 // pred_region
      %s16 = ssub.s32 64, 64
      %17 = vsyncadd [#allocation3], %s16
      %s19 = sshll.u32 [#allocation2], 4
      %s20 = int_to_ptr.vmem [resolvable:$true] %s19
      %22 = dma.hbm_to_vmem [thread:$0]  %s0, 64, %s20, [#allocation3]
    $region5: #{tpu_custom_call.1} parent=1 // pred_fallthru
      _
    // Predicated region
    $region6: #{tpu_custom_call.1} parent=1 // pred_check
      _
    $region7: #{tpu_custom_call.1} parent=1 // pred_check_branch
      %24 = sbr.rel (0) target = $region9
    $region8: #{tpu_custom_call.1} parent=1 // pred_region
      %s26 = ssub.s32 512, 512
      %27 = vsyncadd [#allocation6], %s26
      %s28 = sshll.u32 [#allocation5], 4
      %s29 = int_to_ptr.vmem [resolvable:$true] %s28
      %34 = dma.hbm_to_vmem [thread:$0]  %s1, 512, %s29, [#allocation6], 64, 64, 4
    $region9: #{tpu_custom_call.1} parent=1 // pred_fallthru
      _
    // Predicated region
    $region10: #{tpu_custom_call.1} parent=1 // pred_check
      _
    $region11: #{tpu_custom_call.1} parent=1 // pred_check_branch
      %36 = sbr.rel (0) target = $region13
    $region12: #{tpu_custom_call.1} parent=1 // pred_region
      _
    $region13: #{tpu_custom_call.1} parent=1 // pred_fallthru
      _
    // Predicated region
    $region14: #{tpu_custom_call.1} parent=1 // pred_check
      _
    $region15: #{tpu_custom_call.1} parent=1 // pred_check_branch
      %38 = sbr.rel (0) target = $region17
    $region16: #{tpu_custom_call.1} parent=1 // pred_region
      %s40 = ssub.s32 1024, 1024
      %41 = vsyncadd [#allocation6], %s40
      %s42 = sshll.u32 [#allocation7], 4
      %s43 = int_to_ptr.vmem [resolvable:$true] %s42
      %48 = dma.hbm_to_vmem [thread:$0]  %s3, 1024, %s43, [#allocation6], 64, 64, 4
    $region17: #{tpu_custom_call.1} parent=1 // pred_fallthru
      _
    // Predicated region
    $region18: #{tpu_custom_call.1} parent=1 // pred_check
      _
    $region19: #{tpu_custom_call.1} parent=1 // pred_check_branch
      %50 = sbr.rel (0) target = $region21
    $region20: #{tpu_custom_call.1} parent=1 // pred_region
      _
    $region21: #{tpu_custom_call.1} parent=1 // pred_fallthru
      _
    // Predicated region
    $region22: #{tpu_custom_call.1} parent=1 // pred_check
      _
    $region23: #{tpu_custom_call.1} parent=1 // pred_check_branch
      %52 = sbr.rel (0) target = $region25
    $region24: #{tpu_custom_call.1} parent=1 // pred_region
      %53 = dma.done [#allocation3], 64
    $region25: #{tpu_custom_call.1} parent=1 // pred_fallthru
      _
    // Predicated region
    $region26: #{tpu_custom_call.1} parent=1 // pred_check
      _
    $region27: #{tpu_custom_call.1} parent=1 // pred_check_branch
      %55 = sbr.rel (0) target = $region29
    $region28: #{tpu_custom_call.1} parent=1 // pred_region
      %56 = dma.done [#allocation6], 512
    $region29: #{tpu_custom_call.1} parent=1 // pred_fallthru
      _
    // Predicated region
    $region30: #{tpu_custom_call.1} parent=1 // pred_check
      _
    $region31: #{tpu_custom_call.1} parent=1 // pred_check_branch
      %58 = sbr.rel (0) target = $region33
    $region32: #{tpu_custom_call.1} parent=1 // pred_region
      %59 = dma.done [#allocation6], 1024
    $region33: #{tpu_custom_call.1} parent=1 // pred_fallthru
      _
    %v61 = vld [vmem:[#allocation2] sm:$0xf]
    %v62 = vld [vmem:[#allocation5] sm:$0xf]
    %v63 = vld [vmem:[#allocation5 + $0x4] sm:$0xf]
    %v64 = vld [vmem:[#allocation5 + $0x8] sm:$0xf]
    %v65 = vld [vmem:[#allocation5 + $0xc] sm:$0xf]
    %v66 = vld [vmem:[#allocation5 + $0x10] sm:$0xf]
    %v67 = vld [vmem:[#allocation5 + $0x14] sm:$0xf]
    %v68 = vld [vmem:[#allocation5 + $0x18] sm:$0xf]
    %v69 = vld [vmem:[#allocation5 + $0x1c] sm:$0xf]
    %v70 = vld [vmem:[%s2] sm:$0x1]
    %v72 = vlaneseq
    %v73 = vshrl.u32 %v72, 7
    %v74 = vsub.s32 0, %v73
    %v75 = vrot.slane %v70, %v74
    %v85 = vunpack.c.l.b16 %v62
    %v86 = vunpack.c.l.b16 %v63
    %v87 = vunpack.c.l.b16 %v64
    %v88 = vunpack.c.l.b16 %v65
    %v89 = vunpack.c.l.b16 %v66
    %v90 = vunpack.c.l.b16 %v67
    %v91 = vunpack.c.l.b16 %v68
    %v92 = vunpack.c.l.b16 %v69
    %v93 = vpack.c.b16 %v86, %v85
    %v94 = vpack.c.b16 %v88, %v87
    %v95 = vpack.c.b16 %v90, %v89
    %v96 = vpack.c.b16 %v92, %v91
    %vm101 = vcmask 523264
    %v103 = vsel %vm101, %v61, 0
    %105 = vmatprep.subr.bf16.mxu0 0
    %106 = vmatpush1.bf16.msra.mxu0 0
    %107 = vmatprep.subr.bf16.mxu0 0
    %108 = vmatpush1.bf16.msra.mxu0 0
    %109 = vmatprep.subr.bf16.mxu0 0
    %110 = vmatpush1.bf16.msra.mxu0 0
    %111 = vmatprep.subr.bf16.mxu0 0
    %112 = vmatpush1.bf16.msra.mxu0 0
    %113 = vmatprep.subr.bf16.mxu0 0
    %114 = vmatpush1.bf16.msra.mxu0 %v96
    %115 = vmatprep.subr.bf16.mxu0 0
    %116 = vmatpush1.bf16.msra.mxu0 %v95
    %117 = vmatprep.subr.bf16.mxu0 0
    %118 = vmatpush1.bf16.msra.mxu0 %v94
    %119 = vmatprep.subr.bf16.mxu0 0
    %120 = vmatpush1.bf16.msra.mxu0 %v93
    %121 = vmatprep.subr.bf16.mxu0 0
    %122 = vmatpush2.bf16.msra.mxu0 0
    %123 = vmatprep.subr.bf16.mxu0 0
    %124 = vmatpush2.bf16.msra.mxu0 0
    %125 = vmatprep.subr.bf16.mxu0 0
    %126 = vmatpush2.bf16.msra.mxu0 0
    %127 = vmatprep.subr.bf16.mxu0 0
    %128 = vmatpush2.bf16.msra.mxu0 0
    %129 = vmatprep.subr.bf16.mxu0 0
    %130 = vmatpush2.bf16.msra.mxu0 0
    %131 = vmatprep.subr.bf16.mxu0 0
    %132 = vmatpush2.bf16.msra.mxu0 0
    %133 = vmatprep.subr.bf16.mxu0 0
    %134 = vmatpush2.bf16.msra.mxu0 0
    %135 = vmatprep.subr.bf16.mxu0 0
    %136 = vmatpush2.bf16.msra.mxu0 0
    %137 = vmatprep.mubr.bf16.mxu0 0
    %138 = vmatmul.mubr.bf16.gmra.mxu0 %v103
    %v139 = vpop.f32.mrf.mxu0
    %v140 = vadd.f32 %v75, %v139
    %v141 = vpop.f32.mrf.mxu0
    %v142 = vpop.f32.mrf.mxu0
    %v143 = vpop.f32.mrf.mxu0
    %144 = vdwg.mxu0
    %v145 = vlaneseq
    %v146 = vand.u32 %v145, 127
    %vm147 = vcmp.lt.s32.totalorder %v146, 64
    %v148 = vmul.f32 %v140, 0.5
    %v149 = vmul.f32 %v140, 0.70710677
    %v150 = verf.f32.pop %v149
    %v151 = vadd.f32 %v150, 1.0
    %v152 = vmul.f32 %v148, %v151
    %vm153 = vcmp.ge.f32.partialorder %v140, 0.0
    %v154 = vmul.f32 %v140, 0.01
    %v155 = vsel %vm153, %v140, %v154
    %v156 = vsel %vm147, %v152, %v155
    %v157 = vpack.c.bf16 %v156, %v156
    %v158 = vld [vmem:[#allocation7] sm:$0xf]
    %v159 = vld [vmem:[#allocation7 + $0x4] sm:$0xf]
    %v160 = vld [vmem:[#allocation7 + $0x8] sm:$0xf]
    %v161 = vld [vmem:[#allocation7 + $0xc] sm:$0xf]
    %v162 = vld [vmem:[#allocation7 + $0x10] sm:$0xf]
    %v163 = vld [vmem:[#allocation7 + $0x14] sm:$0xf]
    %v164 = vld [vmem:[#allocation7 + $0x18] sm:$0xf]
    %v165 = vld [vmem:[#allocation7 + $0x1c] sm:$0xf]
    %v166 = vld [vmem:[#allocation7 + $0x20] sm:$0xf]
    %v167 = vld [vmem:[#allocation7 + $0x24] sm:$0xf]
    %v168 = vld [vmem:[#allocation7 + $0x28] sm:$0xf]
    %v169 = vld [vmem:[#allocation7 + $0x2c] sm:$0xf]
    %v170 = vld [vmem:[#allocation7 + $0x30] sm:$0xf]
    %v171 = vld [vmem:[#allocation7 + $0x34] sm:$0xf]
    %v172 = vld [vmem:[#allocation7 + $0x38] sm:$0xf]
    %v173 = vld [vmem:[#allocation7 + $0x3c] sm:$0xf]
    %v174 = vld [vmem:[%s4] sm:$0x1]
    %v176 = vlaneseq
    %v177 = vshrl.u32 %v176, 7
    %v178 = vsub.s32 0, %v177
    %v179 = vrot.slane %v174, %v178
    %v197 = vunpack.c.l.b16 %v158
    %v198 = vunpack.c.l.b16 %v159
    %v199 = vunpack.c.l.b16 %v160
    %v200 = vunpack.c.l.b16 %v161
    %v201 = vunpack.c.l.b16 %v162
    %v202 = vunpack.c.l.b16 %v163
    %v203 = vunpack.c.l.b16 %v164
    %v204 = vunpack.c.l.b16 %v165
    %v205 = vunpack.c.l.b16 %v166
    %v206 = vunpack.c.l.b16 %v167
    %v207 = vunpack.c.l.b16 %v168
    %v208 = vunpack.c.l.b16 %v169
    %v209 = vunpack.c.l.b16 %v170
    %v210 = vunpack.c.l.b16 %v171
    %v211 = vunpack.c.l.b16 %v172
    %v212 = vunpack.c.l.b16 %v173
    %v213 = vpack.c.b16 %v198, %v197
    %v214 = vpack.c.b16 %v200, %v199
    %v215 = vpack.c.b16 %v202, %v201
    %v216 = vpack.c.b16 %v204, %v203
    %v217 = vpack.c.b16 %v206, %v205
    %v218 = vpack.c.b16 %v208, %v207
    %v219 = vpack.c.b16 %v210, %v209
    %v220 = vpack.c.b16 %v212, %v211
    %229 = vmatprep.subr.bf16.mxu0 0
    %230 = vmatpush1.bf16.msra.mxu0 %v220
    %231 = vmatprep.subr.bf16.mxu0 0
    %232 = vmatpush1.bf16.msra.mxu0 %v219
    %233 = vmatprep.subr.bf16.mxu0 0
    %234 = vmatpush1.bf16.msra.mxu0 %v218
    %235 = vmatprep.subr.bf16.mxu0 0
    %236 = vmatpush1.bf16.msra.mxu0 %v217
    %237 = vmatprep.subr.bf16.mxu0 0
    %238 = vmatpush1.bf16.msra.mxu0 %v216
    %239 = vmatprep.subr.bf16.mxu0 0
    %240 = vmatpush1.bf16.msra.mxu0 %v215
    %241 = vmatprep.subr.bf16.mxu0 0
    %242 = vmatpush1.bf16.msra.mxu0 %v214
    %243 = vmatprep.subr.bf16.mxu0 0
    %244 = vmatpush1.bf16.msra.mxu0 %v213
    %245 = vmatprep.subr.bf16.mxu0 0
    %246 = vmatpush2.bf16.msra.mxu0 0
    %247 = vmatprep.subr.bf16.mxu0 0
    %248 = vmatpush2.bf16.msra.mxu0 0
    %249 = vmatprep.subr.bf16.mxu0 0
    %250 = vmatpush2.bf16.msra.mxu0 0
    %251 = vmatprep.subr.bf16.mxu0 0
    %252 = vmatpush2.bf16.msra.mxu0 0
    %253 = vmatprep.subr.bf16.mxu0 0
    %254 = vmatpush2.bf16.msra.mxu0 0
    %255 = vmatprep.subr.bf16.mxu0 0
    %256 = vmatpush2.bf16.msra.mxu0 0
    %257 = vmatprep.subr.bf16.mxu0 0
    %258 = vmatpush2.bf16.msra.mxu0 0
    %259 = vmatprep.subr.bf16.mxu0 0
    %260 = vmatpush2.bf16.msra.mxu0 0
    %261 = vmatprep.mubr.bf16.mxu0 0
    %262 = vmatmul.mubr.bf16.gmra.mxu0 %v157
    %v263 = vpop.f32.mrf.mxu0
    %v264 = vadd.f32 %v179, %v263
    %v265 = vpop.f32.mrf.mxu0
    %v266 = vpop.f32.mrf.mxu0
    %v267 = vpop.f32.mrf.mxu0
    %268 = vdwg.mxu0
    %269 = vst [vmem:[#allocation8] sm:$0xff] %v264
    // Predicated region
    $region34: #{tpu_custom_call.1} parent=1 // pred_check
      _
    $region35: #{tpu_custom_call.1} parent=1 // pred_check_branch
      %271 = sbr.rel (0) target = $region37
    $region36: #{tpu_custom_call.1} parent=1 // pred_region
      %s273 = ssub.s32 128, 128
      %274 = vsyncadd [#allocation4], %s273
      %s276 = sshll.u32 [#allocation8], 4
      %s277 = int_to_ptr.vmem [resolvable:$true] %s276
      %279 = dma.vmem_to_hbm [thread:$0]  %s277, 128, %s5, [#allocation4]
    $region37: #{tpu_custom_call.1} parent=1 // pred_fallthru
      _
    // Predicated region
    $region38: #{tpu_custom_call.1} parent=1 // pred_check
      _
    $region39: #{tpu_custom_call.1} parent=1 // pred_check_branch
      %281 = sbr.rel (0) target = $region41
    $region40: #{tpu_custom_call.1} parent=1 // pred_region
      %282 = dma.done [#allocation4], 128
    $region41: #{tpu_custom_call.1} parent=1 // pred_fallthru
      _
    %283 = vsyncpa [#allocation3], 1
    %284 = vsyncpa [#allocation6], 1
    %285 = vsyncpa [#allocation4], 1

// kernel: tpu_custom_call.1
$region0: #{tpu_custom_call.1}
  #allocation0 [shape = 'u32[]', space=smem, size = 0x4, offset = 0x4, fixed_abs, tag = 'smem constant byte address 0x4 - core index']
  #allocation1 [shape = 'u32[144,128]{1,0:T(1,128)}', space=vmem, size = 0x12000, scoped, tag = 'internal scratch']
  %s0 = inlined_call_operand.hbm [shape: bf16[8,64], index: 0, kind: input, shape index: {}]
  %s1 = inlined_call_operand.hbm [shape: bf16[64,128], index: 1, kind: input, shape index: {}]
  %s2 = inlined_call_operand.vmem [shape: f32[1,128], index: 2, kind: input, shape index: {}]
  %s3 = inlined_call_operand.hbm [shape: bf16[128,128], index: 3, kind: input, shape index: {}]
  %s4 = inlined_call_operand.vmem [shape: f32[1,128], index: 4, kind: input, shape index: {}]
  %s5 = inlined_call_operand.hbm [shape: f32[8,128], index: 5, kind: output, shape index: {}]
  %s6 = sld [smem:[#allocation0]]
  $region42: #{tpu_custom_call.1} parent=0
    _
  %s8 = ssub.s32 1, %s6
  %s9 = scalar_select 0, %s8, %s6
  $region1: #{tpu_custom_call.1} parent=0
    #allocation2 [shape = 'u8[2048]{0}', space=vmem, size = 0x800, scoped, tag = 'input window, operand 0, single buffered']
    #allocation3 [shape = 's32[1]{0}', space=sflag, size = 0x4, scoped, tag = 'scoped memory for tpu_custom_call.1']
    #allocation4 [shape = 's32[1]{0}', space=sflag, size = 0x4, scoped, tag = 'scoped memory for tpu_custom_call.1']
    #allocation5 [shape = 'u8[16384]{0}', space=vmem, size = 0x4000, scoped, tag = 'input window, operand 1, single buffered']
    #allocation6 [shape = 's32[1]{0}', space=sflag, size = 0x4, scoped, tag = 'scoped memory for tpu_custom_call.1']
    #allocation7 [shape = 'u8[32768]{0}', space=vmem, size = 0x8000, scoped, tag = 'input window, operand 3, single buffered']
    #allocation8 [shape = 'u8[4096]{0}', space=vmem, size = 0x1000, scoped, tag = 'output window, operand 0, single buffered']
    %10 = vsyncpa [#allocation3], 0
    %11 = vsyncpa [#allocation6], 0
    %12 = vsyncpa [#allocation4], 0
    // Predicated region
    $region2: #{tpu_custom_call.1} parent=1 // pred_check
      _
    $region3: #{tpu_custom_call.1} parent=1 // pred_check_branch
      %14 = sbr.rel (0) target = $region5
    $region4: #{tpu_custom_call.1} parent=1 // pred_region
      %s16 = ssub.s32 64, 64
      %17 = vsyncadd [#allocation3], %s16
      %s19 = sshll.u32 [#allocation2], 4
      %s20 = int_to_ptr.vmem [resolvable:$true] %s19
      %22 = dma.hbm_to_vmem [thread:$0]  %s0, 64, %s20, [#allocation3]
    $region5: #{tpu_custom_call.1} parent=1 // pred_fallthru
      _
    // Predicated region
    $region6: #{tpu_custom_call.1} parent=1 // pred_check
      _
    $region7: #{tpu_custom_call.1} parent=1 // pred_check_branch
      %24 = sbr.rel (0) target = $region9
    $region8: #{tpu_custom_call.1} parent=1 // pred_region
      %s26 = ssub.s32 512, 512
      %27 = vsyncadd [#allocation6], %s26
      %s28 = sshll.u32 [#allocation5], 4
      %s29 = int_to_ptr.vmem [resolvable:$true] %s28
      %34 = dma.hbm_to_vmem [thread:$0]  %s1, 512, %s29, [#allocation6], 64, 64, 4
    $region9: #{tpu_custom_call.1} parent=1 // pred_fallthru
      _
    // Predicated region
    $region10: #{tpu_custom_call.1} parent=1 // pred_check
      _
    $region11: #{tpu_custom_call.1} parent=1 // pred_check_branch
      %36 = sbr.rel (0) target = $region13
    $region12: #{tpu_custom_call.1} parent=1 // pred_region
      _
    $region13: #{tpu_custom_call.1} parent=1 // pred_fallthru
      _
    // Predicated region
    $region14: #{tpu_custom_call.1} parent=1 // pred_check
      _
    $region15: #{tpu_custom_call.1} parent=1 // pred_check_branch
      %38 = sbr.rel (0) target = $region17
    $region16: #{tpu_custom_call.1} parent=1 // pred_region
      %s40 = ssub.s32 1024, 1024
      %41 = vsyncadd [#allocation6], %s40
      %s42 = sshll.u32 [#allocation7], 4
      %s43 = int_to_ptr.vmem [resolvable:$true] %s42
      %48 = dma.hbm_to_vmem [thread:$0]  %s3, 1024, %s43, [#allocation6], 64, 64, 4
    $region17: #{tpu_custom_call.1} parent=1 // pred_fallthru
      _
    // Predicated region
    $region18: #{tpu_custom_call.1} parent=1 // pred_check
      _
    $region19: #{tpu_custom_call.1} parent=1 // pred_check_branch
      %50 = sbr.rel (0) target = $region21
    $region20: #{tpu_custom_call.1} parent=1 // pred_region
      _
    $region21: #{tpu_custom_call.1} parent=1 // pred_fallthru
      _
    // Predicated region
    $region22: #{tpu_custom_call.1} parent=1 // pred_check
      _
    $region23: #{tpu_custom_call.1} parent=1 // pred_check_branch
      %52 = sbr.rel (0) target = $region25
    $region24: #{tpu_custom_call.1} parent=1 // pred_region
      %53 = dma.done [#allocation3], 64
    $region25: #{tpu_custom_call.1} parent=1 // pred_fallthru
      _
    // Predicated region
    $region26: #{tpu_custom_call.1} parent=1 // pred_check
      _
    $region27: #{tpu_custom_call.1} parent=1 // pred_check_branch
      %55 = sbr.rel (0) target = $region29
    $region28: #{tpu_custom_call.1} parent=1 // pred_region
      %56 = dma.done [#allocation6], 512
    $region29: #{tpu_custom_call.1} parent=1 // pred_fallthru
      _
    // Predicated region
    $region30: #{tpu_custom_call.1} parent=1 // pred_check
      _
    $region31: #{tpu_custom_call.1} parent=1 // pred_check_branch
      %58 = sbr.rel (0) target = $region33
    $region32: #{tpu_custom_call.1} parent=1 // pred_region
      %59 = dma.done [#allocation6], 1024
    $region33: #{tpu_custom_call.1} parent=1 // pred_fallthru
      _
    %v61 = vld [vmem:[#allocation2] sm:$0xf]
    %v62 = vld [vmem:[#allocation5] sm:$0xf]
    %v63 = vld [vmem:[#allocation5 + $0x4] sm:$0xf]
    %v64 = vld [vmem:[#allocation5 + $0x8] sm:$0xf]
    %v65 = vld [vmem:[#allocation5 + $0xc] sm:$0xf]
    %v66 = vld [vmem:[#allocation5 + $0x10] sm:$0xf]
    %v67 = vld [vmem:[#allocation5 + $0x14] sm:$0xf]
    %v68 = vld [vmem:[#allocation5 + $0x18] sm:$0xf]
    %v69 = vld [vmem:[#allocation5 + $0x1c] sm:$0xf]
    %v70 = vld [vmem:[%s2] sm:$0x1]
    %v72 = vlaneseq
    %v73 = vshrl.u32 %v72, 7
    %v74 = vsub.s32 0, %v73
    %v75 = vrot.slane %v70, %v74
    %v85 = vunpack.c.l.b16 %v62
    %v86 = vunpack.c.l.b16 %v63
    %v87 = vunpack.c.l.b16 %v64
    %v88 = vunpack.c.l.b16 %v65
    %v89 = vunpack.c.l.b16 %v66
    %v90 = vunpack.c.l.b16 %v67
    %v91 = vunpack.c.l.b16 %v68
    %v92 = vunpack.c.l.b16 %v69
    %v93 = vpack.c.b16 %v86, %v85
    %v94 = vpack.c.b16 %v88, %v87
    %v95 = vpack.c.b16 %v90, %v89
    %v96 = vpack.c.b16 %v92, %v91
    %vm101 = vcmask 523264
    %v103 = vsel %vm101, %v61, 0
    %105 = vmatprep.subr.bf16.mxu0 0
    %106 = vmatpush1.bf16.msra.mxu0 0
    %107 = vmatprep.subr.bf16.mxu0 0
    %108 = vmatpush1.bf16.msra.mxu0 0
    %109 = vmatprep.subr.bf16.mxu0 0
    %110 = vmatpush1.bf16.msra.mxu0 0
    %111 = vmatprep.subr.bf16.mxu0 0
    %112 = vmatpush1.bf16.msra.mxu0 0
    %113 = vmatprep.subr.bf16.mxu0 0
    %114 = vmatpush1.bf16.msra.mxu0 %v96
    %115 = vmatprep.subr.bf16.mxu0 0
    %116 = vmatpush1.bf16.msra.mxu0 %v95
    %117 = vmatprep.subr.bf16.mxu0 0
    %118 = vmatpush1.bf16.msra.mxu0 %v94
    %119 = vmatprep.subr.bf16.mxu0 0
    %120 = vmatpush1.bf16.msra.mxu0 %v93
    %121 = vmatprep.subr.bf16.mxu0 0
    %122 = vmatpush2.bf16.msra.mxu0 0
    %123 = vmatprep.subr.bf16.mxu0 0
    %124 = vmatpush2.bf16.msra.mxu0 0
    %125 = vmatprep.subr.bf16.mxu0 0
    %126 = vmatpush2.bf16.msra.mxu0 0
    %127 = vmatprep.subr.bf16.mxu0 0
    %128 = vmatpush2.bf16.msra.mxu0 0
    %129 = vmatprep.subr.bf16.mxu0 0
    %130 = vmatpush2.bf16.msra.mxu0 0
    %131 = vmatprep.subr.bf16.mxu0 0
    %132 = vmatpush2.bf16.msra.mxu0 0
    %133 = vmatprep.subr.bf16.mxu0 0
    %134 = vmatpush2.bf16.msra.mxu0 0
    %135 = vmatprep.subr.bf16.mxu0 0
    %136 = vmatpush2.bf16.msra.mxu0 0
    %137 = vmatprep.mubr.bf16.mxu0 0
    %138 = vmatmul.mubr.bf16.gmra.mxu0 %v103
    %v139 = vpop.f32.mrf.mxu0
    %v140 = vadd.f32 %v75, %v139
    %v141 = vpop.f32.mrf.mxu0
    %v142 = vpop.f32.mrf.mxu0
    %v143 = vpop.f32.mrf.mxu0
    %144 = vdwg.mxu0
    %v145 = vlaneseq
    %v146 = vand.u32 %v145, 127
    %vm147 = vcmp.lt.s32.totalorder %v146, 64
    %v148 = vmul.f32 %v140, 0.5
    %v149 = vmul.f32 %v140, 0.70710677
    %v150 = verf.f32.pop %v149
    %v151 = vadd.f32 %v150, 1.0
    %v152 = vmul.f32 %v148, %v151
    %vm153 = vcmp.ge.f32.partialorder %v140, 0.0
    %v154 = vmul.f32 %v140, 0.01
    %v155 = vsel %vm153, %v140, %v154
    %v156 = vsel %vm147, %v152, %v155
    %v157 = vpack.c.bf16 %v156, %v156
    %v158 = vld [vmem:[#allocation7] sm:$0xf]
    %v159 = vld [vmem:[#allocation7 + $0x4] sm:$0xf]
    %v160 = vld [vmem:[#allocation7 + $0x8] sm:$0xf]
    %v161 = vld [vmem:[#allocation7 + $0xc] sm:$0xf]
    %v162 = vld [vmem:[#allocation7 + $0x10] sm:$0xf]
    %v163 = vld [vmem:[#allocation7 + $0x14] sm:$0xf]
    %v164 = vld [vmem:[#allocation7 + $0x18] sm:$0xf]
    %v165 = vld [vmem:[#allocation7 + $0x1c] sm:$0xf]
    %v166 = vld [vmem:[#allocation7 + $0x20] sm:$0xf]
    %v167 = vld [vmem:[#allocation7 + $0x24] sm:$0xf]
    %v168 = vld [vmem:[#allocation7 + $0x28] sm:$0xf]
    %v169 = vld [vmem:[#allocation7 + $0x2c] sm:$0xf]
    %v170 = vld [vmem:[#allocation7 + $0x30] sm:$0xf]
    %v171 = vld [vmem:[#allocation7 + $0x34] sm:$0xf]
    %v172 = vld [vmem:[#allocation7 + $0x38] sm:$0xf]
    %v173 = vld [vmem:[#allocation7 + $0x3c] sm:$0xf]
    %v174 = vld [vmem:[%s4] sm:$0x1]
    %v176 = vlaneseq
    %v177 = vshrl.u32 %v176, 7
    %v178 = vsub.s32 0, %v177
    %v179 = vrot.slane %v174, %v178
    %v197 = vunpack.c.l.b16 %v158
    %v198 = vunpack.c.l.b16 %v159
    %v199 = vunpack.c.l.b16 %v160
    %v200 = vunpack.c.l.b16 %v161
    %v201 = vunpack.c.l.b16 %v162
    %v202 = vunpack.c.l.b16 %v163
    %v203 = vunpack.c.l.b16 %v164
    %v204 = vunpack.c.l.b16 %v165
    %v205 = vunpack.c.l.b16 %v166
    %v206 = vunpack.c.l.b16 %v167
    %v207 = vunpack.c.l.b16 %v168
    %v208 = vunpack.c.l.b16 %v169
    %v209 = vunpack.c.l.b16 %v170
    %v210 = vunpack.c.l.b16 %v171
    %v211 = vunpack.c.l.b16 %v172
    %v212 = vunpack.c.l.b16 %v173
    %v213 = vpack.c.b16 %v198, %v197
    %v214 = vpack.c.b16 %v200, %v199
    %v215 = vpack.c.b16 %v202, %v201
    %v216 = vpack.c.b16 %v204, %v203
    %v217 = vpack.c.b16 %v206, %v205
    %v218 = vpack.c.b16 %v208, %v207
    %v219 = vpack.c.b16 %v210, %v209
    %v220 = vpack.c.b16 %v212, %v211
    %229 = vmatprep.subr.bf16.mxu0 0
    %230 = vmatpush1.bf16.msra.mxu0 %v220
    %231 = vmatprep.subr.bf16.mxu0 0
    %232 = vmatpush1.bf16.msra.mxu0 %v219
    %233 = vmatprep.subr.bf16.mxu0 0
    %234 = vmatpush1.bf16.msra.mxu0 %v218
    %235 = vmatprep.subr.bf16.mxu0 0
    %236 = vmatpush1.bf16.msra.mxu0 %v217
    %237 = vmatprep.subr.bf16.mxu0 0
    %238 = vmatpush1.bf16.msra.mxu0 %v216
    %239 = vmatprep.subr.bf16.mxu0 0
    %240 = vmatpush1.bf16.msra.mxu0 %v215
    %241 = vmatprep.subr.bf16.mxu0 0
    %242 = vmatpush1.bf16.msra.mxu0 %v214
    %243 = vmatprep.subr.bf16.mxu0 0
    %244 = vmatpush1.bf16.msra.mxu0 %v213
    %245 = vmatprep.subr.bf16.mxu0 0
    %246 = vmatpush2.bf16.msra.mxu0 0
    %247 = vmatprep.subr.bf16.mxu0 0
    %248 = vmatpush2.bf16.msra.mxu0 0
    %249 = vmatprep.subr.bf16.mxu0 0
    %250 = vmatpush2.bf16.msra.mxu0 0
    %251 = vmatprep.subr.bf16.mxu0 0
    %252 = vmatpush2.bf16.msra.mxu0 0
    %253 = vmatprep.subr.bf16.mxu0 0
    %254 = vmatpush2.bf16.msra.mxu0 0
    %255 = vmatprep.subr.bf16.mxu0 0
    %256 = vmatpush2.bf16.msra.mxu0 0
    %257 = vmatprep.subr.bf16.mxu0 0
    %258 = vmatpush2.bf16.msra.mxu0 0
    %259 = vmatprep.subr.bf16.mxu0 0
    %260 = vmatpush2.bf16.msra.mxu0 0
    %261 = vmatprep.mubr.bf16.mxu0 0
    %262 = vmatmul.mubr.bf16.gmra.mxu0 %v157
    %v263 = vpop.f32.mrf.mxu0
    %v264 = vadd.f32 %v179, %v263
    %v265 = vpop.f32.mrf.mxu0
    %v266 = vpop.f32.mrf.mxu0
    %v267 = vpop.f32.mrf.mxu0
    %268 = vdwg.mxu0
    %269 = vst [vmem:[#allocation8] sm:$0xff] %v264
    // Predicated region
    $region34: #{tpu_custom_call.1} parent=1 // pred_check
      _
    $region35: #{tpu_custom_call.1} parent=1 // pred_check_branch
      %271 = sbr.rel (0) target = $region37
    $region36: #{tpu_custom_call.1} parent=1 // pred_region
      %s273 = ssub.s32 128, 128
      %274 = vsyncadd [#allocation4], %s273
      %s276 = sshll.u32 [#allocation8], 4
      %s277 = int_to_ptr.vmem [resolvable:$true] %s276
      %279 = dma.vmem_to_hbm [thread:$0]  %s277, 128, %s5, [#allocation4]
    $region37: #{tpu_custom_call.1} parent=1 // pred_fallthru
      _
    // Predicated region
    $region38: #{tpu_custom_call.1} parent=1 // pred_check
      _
    $region39: #{tpu_custom_call.1} parent=1 // pred_check_branch
      %281 = sbr.rel (0) target = $region41
    $region40: #{tpu_custom_call.1} parent=1 // pred_region
      %282 = dma.done [#allocation4], 128
    $region41: #{tpu_custom_call.1} parent=1 // pred_fallthru
      _
    %283 = vsyncpa [#allocation3], 1
    %284 = vsyncpa [#allocation6], 1
    %285 = vsyncpa [#allocation4], 1

</llo_original>
